<compile_context>
chip_gen: v5e
topology: v5e:2x2
jax: 0.10.0
libtpu: 0.0.40
codegen_flags: <defaults>
</compile_context>

<pallas_src>
import jax
import jax.numpy as jnp
from jax.experimental import pallas as pl
from jax.experimental.pallas import tpu as pltpu


def _round_up(x, m):
    return (x + m - 1) // m * m


def _tpu_defaults():
    """Generation-aware tile caps and VMEM limit."""
    try:
        kind = jax.devices()[0].device_kind.lower()
    except Exception:  # pragma: no cover
        kind = ""
    if "v6" in kind:
        # 128 MiB physical VMEM, high compute roofline -> big batch tiles.
        return dict(tm_cap=1024, tk_cap=4096, vmem=96 * 1024 * 1024)
    if "v5" in kind:
        return dict(tm_cap=512, tk_cap=4096, vmem=96 * 1024 * 1024)
    # v7x (64 MiB physical VMEM per TC) or unknown: conservative.
    return dict(tm_cap=512, tk_cap=2048, vmem=48 * 1024 * 1024)


def _choose_k_tiling(K, tk_cap):
    """Pick tk (multiple of 128) so K padding stays small; return (tk, K_pad)."""
    K128 = _round_up(max(K, 1), 128)
    nk = max(1, -(-K128 // tk_cap))          # number of k steps
    tk = _round_up(-(-K128 // nk), 128)      # per-step tile, 128-aligned
    return tk, nk * tk


def prepare_featurizer_params(w, b, *, compute_dtype=jnp.bfloat16, tk_cap=None):
    """Pad + cast the (fixed) weights ONCE; reuse across featurizer() calls."""
    if tk_cap is None:
        tk_cap = _tpu_defaults()["tk_cap"]
    K, D = int(w.shape[0]), int(w.shape[1])
    tk, K_pad = _choose_k_tiling(K, tk_cap)
    D_pad = _round_up(D, 128)                # lane-dense output stores

    if (K_pad, D_pad) == (K, D):
        w_p = w.astype(compute_dtype)
    else:
        w_p = jnp.pad(w.astype(compute_dtype),
                      ((0, K_pad - K), (0, D_pad - D)))
    b_p = jnp.zeros((1, D_pad), jnp.float32).at[0, :D].set(
        b.astype(jnp.float32))

    return dict(w_p=w_p, b_p=b_p, tk=tk, K=K, K_pad=K_pad, D=D, D_pad=D_pad,
                compute_dtype=compute_dtype)


def featurizer_kernel(x_ref, w_ref, b_ref, o_ref):
    # x_ref: [tm, tk] bf16, w_ref: [tk, D_pad] bf16, b_ref: [1, D_pad] f32,
    # o_ref: [tm, D_pad] f32 -- VMEM-resident across the K axis (accumulator).
    k = pl.program_id(1)

    # Initialize the accumulator with the broadcast bias (drops the finalize add).
    @pl.when(k == 0)
    def _():
        o_ref[...] = jnp.broadcast_to(b_ref[...], o_ref.shape)

    # encode_image hot path: MXU matmul with f32 accumulation into the output.
    o_ref[...] += jnp.dot(
        x_ref[...], w_ref[...], preferred_element_type=jnp.float32
    )

    # Finalize once per batch tile: L2 normalize over the FULL (untiled) D.
    @pl.when(k == pl.num_programs(1) - 1)
    def _():
        feats = o_ref[...]
        # F.normalize(dim=-1): x / max(||x||_2, 1e-12)
        #   == x * rsqrt(max(sum(x^2), 1e-24))   (EUP rsqrt, no f32 divide)
        sq = jnp.sum(feats * feats, axis=-1, keepdims=True)
        inv = jax.lax.rsqrt(jnp.maximum(sq, jnp.float32(1e-24)))
        o_ref[...] = feats * inv


def featurizer(x_nchw, w=None, b=None, *, params=None, tm=None,
               compute_dtype=jnp.bfloat16):
    """x_nchw: [B, C, H, W]; w: [C*H*W, D]; b: [D] -> [B, D] L2-normalized f32.

    Pass `params=prepare_featurizer_params(w, b)` to amortize the weight
    pad/cast across repeated featurization calls with fixed weights.
    """
    cfg = _tpu_defaults()
    if params is None:
        params = prepare_featurizer_params(
            w, b, compute_dtype=compute_dtype, tk_cap=cfg["tk_cap"])

    B = int(x_nchw.shape[0])
    K = int(x_nchw.shape[1] * x_nchw.shape[2] * x_nchw.shape[3])
    assert K == params["K"], f"input feature dim {K} != weight rows {params['K']}"

    tk, K_pad = params["tk"], params["K_pad"]
    D, D_pad = params["D"], params["D_pad"]
    cdt = params["compute_dtype"]

    # Batch tile: multiple of 16 (bf16 vreg = [16, 128] sublane packing).
    if tm is None:
        tm = min(cfg["tm_cap"], _round_up(B, 16))
        # Feed both TensorCores (v7x) / megacore: >= 2 batch tiles when B allows.
        if B >= 32 and _round_up(B, tm) // tm < 2:
            tm = max(16, _round_up(-(-B // 2), 16))
    B_pad = _round_up(B, tm)

    # Glue in plain JAX: flatten NCHW, cast, pad only if actually needed.
    x_flat = x_nchw.reshape(B, K).astype(cdt)
    if (B_pad, K_pad) == (B, K):
        x_p = x_flat
    else:
        x_p = jnp.pad(x_flat, ((0, B_pad - B), (0, K_pad - K)))

    grid = (B_pad // tm, K_pad // tk)
    num_btiles = grid[0]
    itemsize = jnp.dtype(cdt).itemsize
    cost = pl.CostEstimate(
        flops=2 * B_pad * K_pad * D_pad,
        transcendentals=B_pad,  # one rsqrt per output row
        bytes_accessed=(B_pad * K_pad * itemsize
                        + num_btiles * K_pad * D_pad * itemsize  # re-streamed per batch tile
                        + B_pad * D_pad * 4),
    )

    out = pl.pallas_call(
        featurizer_kernel,
        out_shape=jax.ShapeDtypeStruct((B_pad, D_pad), jnp.float32),
        grid_spec=pltpu.PrefetchScalarGridSpec(
            num_scalar_prefetch=0,
            grid=grid,
            in_specs=[
                pl.BlockSpec((tm, tk), lambda i, k: (i, k)),       # activations
                pl.BlockSpec((tk, D_pad), lambda i, k: (k, 0)),    # weights (streamed)
                pl.BlockSpec((1, D_pad), lambda i, k: (0, 0)),     # bias
            ],
            out_specs=pl.BlockSpec((tm, D_pad), lambda i, k: (i, 0)),
        ),
        compiler_params=pltpu.CompilerParams(
            dimension_semantics=("parallel", "arbitrary"),
            vmem_limit_bytes=cfg["vmem"],
        ),
        cost_estimate=cost,
    )(x_p, params["w_p"], params["b_p"])

    return out[:B, :D]


if __name__ == "__main__":
    key = jax.random.PRNGKey(0)
    k_x, k_w, k_b = jax.random.split(key, 3)

    # Small shapes consistent with an image encoder input (NCHW).
    B, C, H, W = 2, 4, 16, 16
    D = 32                    # embedding dim (wrapper pads to 128 lanes internally)
    K = C * H * W

    x = jax.random.normal(k_x, (B, C, H, W), dtype=jnp.float32)
    w = jax.random.normal(k_w, (K, D), dtype=jnp.float32) * 0.02
    b = jax.random.normal(k_b, (D,), dtype=jnp.float32) * 0.01

    # Weight pad + bf16 cast hoisted: prepared once, reused across calls.
    params = prepare_featurizer_params(w, b)
    out = featurizer(x, params=params)
    out = jax.block_until_ready(out)

    # Reference (same bf16 input quantization, f32 math, F.normalize semantics).
    xq = x.reshape(B, K).astype(jnp.bfloat16).astype(jnp.float32)
    wq = w.astype(jnp.bfloat16).astype(jnp.float32)
    feats_ref = xq @ wq + b
    denom = jnp.maximum(
        jnp.sqrt(jnp.sum(feats_ref * feats_ref, axis=-1, keepdims=True)), 1e-12
    )
    ref = feats_ref / denom

    assert out.shape == (B, D)
    assert jnp.allclose(out, ref, atol=2e-4, rtol=2e-4)

    print("KERNEL_OK")
</pallas_src>

<mosaic_0001>
module attributes {stable_mosaic.version = 11 : i64} {
  func.func @featurizer_kernel(%arg0: i32, %arg1: i32, %arg2: memref<16x1024xbf16, #tpu.memory_space<vmem>>, %arg3: memref<1024x128xbf16, #tpu.memory_space<vmem>>, %arg4: memref<1x128xf32, #tpu.memory_space<vmem>>, %arg5: memref<16x128xf32, #tpu.memory_space<vmem>>) attributes {dimension_semantics = [#tpu.dimension_semantics<parallel>, #tpu.dimension_semantics<arbitrary>], iteration_bounds = array<i64: 1, 1>, scalar_prefetch = 0 : i64, scratch_operands = 0 : i64, tpu.core_type = #tpu.core_type<tc>, window_params = [{transform_indices = @transform_0, window_bounds = array<i64: 16, 1024>}, {transform_indices = @transform_1, window_bounds = array<i64: 1024, 128>}, {pipeline_mode = #tpu.pipeline_mode<synchronous>, transform_indices = @transform_2, window_bounds = array<i64: 1, 128>}, {transform_indices = @transform_3, window_bounds = array<i64: 16, 128>}]} {
    %c0_i32 = arith.constant 0 : i32
    %0 = arith.cmpi eq, %arg1, %c0_i32 : i32
    %1 = arith.extui %0 : i1 to i32
    %c0_i32_0 = arith.constant 0 : i32
    %2 = arith.cmpi ne, %1, %c0_i32_0 : i32
    scf.if %2 {
      %c0_10 = arith.constant 0 : index
      %c0_11 = arith.constant 0 : index
      %12 = vector.load %arg4[%c0_10, %c0_11] : memref<1x128xf32, #tpu.memory_space<vmem>>, vector<1x128xf32>
      %13 = vector.shape_cast %12 : vector<1x128xf32> to vector<1x128xf32>
      %14 = vector.broadcast %13 : vector<1x128xf32> to vector<16x128xf32>
      %c0_12 = arith.constant 0 : index
      %c0_13 = arith.constant 0 : index
      %15 = vector.load %arg5[%c0_12, %c0_13] : memref<16x128xf32, #tpu.memory_space<vmem>>, vector<16x128xf32>
      tpu.vector_store %arg5[%c0_12, %c0_13], %14 {strides = array<i32>} : memref<16x128xf32, #tpu.memory_space<vmem>>, vector<16x128xf32>,
    } else {
    }
    %c0 = arith.constant 0 : index
    %c0_1 = arith.constant 0 : index
    %3 = vector.load %arg5[%c0, %c0_1] : memref<16x128xf32, #tpu.memory_space<vmem>>, vector<16x128xf32>
    %c0_2 = arith.constant 0 : index
    %c0_3 = arith.constant 0 : index
    %4 = vector.load %arg2[%c0_2, %c0_3] : memref<16x1024xbf16, #tpu.memory_space<vmem>>, vector<16x1024xbf16>
    %c0_4 = arith.constant 0 : index
    %c0_5 = arith.constant 0 : index
    %5 = vector.load %arg3[%c0_4, %c0_5] : memref<1024x128xbf16, #tpu.memory_space<vmem>>, vector<1024x128xbf16>
    %cst = arith.constant dense<0.000000e+00> : vector<16x128xf32>
    %6 = tpu.matmul %4, %5, %cst {dimension_numbers = #tpu.dot_dimension_numbers<[1], [0], [0], [1], [0, 0, 1, 1], [], []>} : vector<16x1024xbf16>, vector<1024x128xbf16>, vector<16x128xf32> -> vector<16x128xf32>
    %7 = arith.addf %3, %6 : vector<16x128xf32>
    %c0_6 = arith.constant 0 : index
    %c0_7 = arith.constant 0 : index
    %8 = vector.load %arg5[%c0_6, %c0_7] : memref<16x128xf32, #tpu.memory_space<vmem>>, vector<16x128xf32>
    tpu.vector_store %arg5[%c0_6, %c0_7], %7 {strides = array<i32>} : memref<16x128xf32, #tpu.memory_space<vmem>>, vector<16x128xf32>,
    %c0_i32_8 = arith.constant 0 : i32
    %9 = arith.cmpi eq, %arg1, %c0_i32_8 : i32
    %10 = arith.extui %9 : i1 to i32
    %c0_i32_9 = arith.constant 0 : i32
    %11 = arith.cmpi ne, %10, %c0_i32_9 : i32
    scf.if %11 {
      %c0_10 = arith.constant 0 : index
      %c0_11 = arith.constant 0 : index
      %12 = vector.load %arg5[%c0_10, %c0_11] : memref<16x128xf32, #tpu.memory_space<vmem>>, vector<16x128xf32>
      %13 = arith.mulf %12, %12 : vector<16x128xf32>
      %cst_12 = arith.constant dense<0.000000e+00> : vector<16xf32>
      %14 = vector.multi_reduction <add>, %13, %cst_12 [1] : vector<16x128xf32> to vector<16xf32>
      %15 = vector.shape_cast %14 : vector<16xf32> to vector<16x1xf32>
      %cst_13 = arith.constant 1.000000e-24 : f32
      %16 = vector.broadcast %cst_13 : f32 to vector<16x1xf32>
      %17 = arith.maximumf %15, %16 : vector<16x1xf32>
      %18 = math.rsqrt %17 : vector<16x1xf32>
      %19 = vector.broadcast %18 : vector<16x1xf32> to vector<16x128xf32>
      %20 = arith.mulf %12, %19 : vector<16x128xf32>
      %c0_14 = arith.constant 0 : index
      %c0_15 = arith.constant 0 : index
      %21 = vector.load %arg5[%c0_14, %c0_15] : memref<16x128xf32, #tpu.memory_space<vmem>>, vector<16x128xf32>
      tpu.vector_store %arg5[%c0_14, %c0_15], %20 {strides = array<i32>} : memref<16x128xf32, #tpu.memory_space<vmem>>, vector<16x128xf32>,
    } else {
    }
    return
  }
  func.func @transform_0(%arg0: i32, %arg1: i32) -> (i32, i32) {
    %c0_i32 = arith.constant 0 : i32
    return %arg0, %arg1 : i32, i32
  }
  func.func @transform_1(%arg0: i32, %arg1: i32) -> (i32, i32) {
    %c0_i32 = arith.constant 0 : i32
    %c0_i32_0 = arith.constant 0 : i32
    return %arg1, %c0_i32 : i32, i32
  }
  func.func @transform_2(%arg0: i32, %arg1: i32) -> (i32, i32) {
    %c0_i32 = arith.constant 0 : i32
    %c0_i32_0 = arith.constant 0 : i32
    %c0_i32_1 = arith.constant 0 : i32
    return %c0_i32, %c0_i32_0 : i32, i32
  }
  func.func @transform_3(%arg0: i32, %arg1: i32) -> (i32, i32) {
    %c0_i32 = arith.constant 0 : i32
    %c0_i32_0 = arith.constant 0 : i32
    return %arg0, %c0_i32 : i32, i32
  }
}

</mosaic_0001>

<llo_original>
// kernel: tpu_custom_call.1
$region0: #{tpu_custom_call.1}
  #allocation0 [shape = 'u32[]', space=smem, size = 0x4, offset = 0x4, fixed_abs, tag = 'smem constant byte address 0x4 - core index']
  #allocation1 [shape = 'u32[72,128]{1,0:T(1,128)}', space=vmem, size = 0x9000, scoped, tag = 'internal scratch']
  %s0 = inlined_call_operand.hbm [shape: bf16[16,1024], index: 0, kind: input, shape index: {}]
  %s1 = inlined_call_operand.hbm [shape: bf16[1024,128], index: 1, kind: input, shape index: {}]
  %s2 = inlined_call_operand.vmem [shape: f32[1,128], index: 2, kind: input, shape index: {}]
  %s3 = inlined_call_operand.hbm [shape: f32[16,128], index: 3, kind: output, shape index: {}]
  %s4 = sld [smem:[#allocation0]]
  $region38: #{tpu_custom_call.1} parent=0
    _
  %s6 = ssub.s32 1, %s4
  %s7 = scalar_select 0, %s6, %s4
  $region1: #{tpu_custom_call.1} parent=0
    #allocation2 [shape = 'u8[32768]{0}', space=vmem, size = 0x8000, scoped, tag = 'input window, operand 0, single buffered']
    #allocation3 [shape = 's32[1]{0}', space=sflag, size = 0x4, scoped, tag = 'scoped memory for tpu_custom_call.1']
    #allocation4 [shape = 's32[1]{0}', space=sflag, size = 0x4, scoped, tag = 'scoped memory for tpu_custom_call.1']
    #allocation5 [shape = 'u8[262144]{0}', space=vmem, size = 0x40000, scoped, tag = 'input window, operand 1, single buffered']
    #allocation6 [shape = 's32[1]{0}', space=sflag, size = 0x4, scoped, tag = 'scoped memory for tpu_custom_call.1']
    #allocation7 [shape = 'u8[8192]{0}', space=vmem, size = 0x2000, scoped, tag = 'output window, operand 0, single buffered']
    %8 = vsyncpa [#allocation3], 0
    %9 = vsyncpa [#allocation6], 0
    %10 = vsyncpa [#allocation4], 0
    // Predicated region
    $region2: #{tpu_custom_call.1} parent=1 // pred_check
      _
    $region3: #{tpu_custom_call.1} parent=1 // pred_check_branch
      %12 = sbr.rel (0) target = $region5
    $region4: #{tpu_custom_call.1} parent=1 // pred_region
      %14 = vsyncadd [#allocation3], 0
      %s15 = sshll.u32 %s0, 4
      %s16 = int_to_ptr.hbm [resolvable:$true] %s15
      %s17 = sshll.u32 [#allocation2], 4
      %s18 = int_to_ptr.vmem [resolvable:$true] %s17
      %23 = dma.hbm_to_vmem [thread:$0]  %s16, 1024, %s18, [#allocation3], 512, 512, 32
    $region5: #{tpu_custom_call.1} parent=1 // pred_fallthru
      _
    // Predicated region
    $region6: #{tpu_custom_call.1} parent=1 // pred_check
      _
    $region7: #{tpu_custom_call.1} parent=1 // pred_check_branch
      %25 = sbr.rel (0) target = $region9
    $region8: #{tpu_custom_call.1} parent=1 // pred_region
      %27 = vsyncadd [#allocation6], 0
      %s28 = sshll.u32 %s1, 4
      %s29 = int_to_ptr.hbm [resolvable:$true] %s28
      %s30 = sshll.u32 [#allocation5], 4
      %s31 = int_to_ptr.vmem [resolvable:$true] %s30
      %36 = dma.hbm_to_vmem [thread:$0]  %s29, 8192, %s31, [#allocation6], 64, 64, 4
    $region9: #{tpu_custom_call.1} parent=1 // pred_fallthru
      _
    // Predicated region
    $region10: #{tpu_custom_call.1} parent=1 // pred_check
      _
    $region11: #{tpu_custom_call.1} parent=1 // pred_check_branch
      %38 = sbr.rel (0) target = $region13
    $region12: #{tpu_custom_call.1} parent=1 // pred_region
      _
    $region13: #{tpu_custom_call.1} parent=1 // pred_fallthru
      _
    // Predicated region
    $region14: #{tpu_custom_call.1} parent=1 // pred_check
      _
    $region15: #{tpu_custom_call.1} parent=1 // pred_check_branch
      %40 = sbr.rel (0) target = $region17
    $region16: #{tpu_custom_call.1} parent=1 // pred_region
      %42 = dma.done [#allocation3], 1024
    $region17: #{tpu_custom_call.1} parent=1 // pred_fallthru
      _
    // Predicated region
    $region18: #{tpu_custom_call.1} parent=1 // pred_check
      _
    $region19: #{tpu_custom_call.1} parent=1 // pred_check_branch
      %44 = sbr.rel (0) target = $region21
    $region20: #{tpu_custom_call.1} parent=1 // pred_region
      %46 = dma.done [#allocation6], 8192
    $region21: #{tpu_custom_call.1} parent=1 // pred_fallthru
      _
    %p47 = scmp.eq.s32.totalorder 0, 0
    // Predicated region
    $region22: #{tpu_custom_call.1} parent=1 // pred_check
      %p48 = pneg %p47
    $region23: #{tpu_custom_call.1} parent=1 // pred_check_branch
      %50 = sbr.rel (%p48) target = $region25
    $region24: #{tpu_custom_call.1} parent=1 // pred_region
      %v51 = vld [vmem:[%s2] sm:$0x1]
      %v53 = vperm.slane %v51, 0
      %55 = vst [vmem:[#allocation7] sm:$0xff] %v53
      %56 = vst [vmem:[#allocation7 + $0x8] sm:$0xff] %v53
    $region25: #{tpu_custom_call.1} parent=1 // pred_fallthru
      _
    %v57 = vld [vmem:[#allocation7] sm:$0xff]
    %v58 = vld [vmem:[#allocation7 + $0x8] sm:$0xff]
    %v59 = vld [vmem:[#allocation2] sm:$0xff]
    %v60 = vld [vmem:[#allocation2 + $0x8] sm:$0xff]
    %v61 = vld [vmem:[#allocation2 + $0x10] sm:$0xff]
    %v62 = vld [vmem:[#allocation2 + $0x18] sm:$0xff]
    %v63 = vld [vmem:[#allocation2 + $0x20] sm:$0xff]
    %v64 = vld [vmem:[#allocation2 + $0x28] sm:$0xff]
    %v65 = vld [vmem:[#allocation2 + $0x30] sm:$0xff]
    %v66 = vld [vmem:[#allocation2 + $0x38] sm:$0xff]
    %v67 = vld [vmem:[#allocation5] sm:$0xf]
    %v68 = vld [vmem:[#allocation5 + $0x4] sm:$0xf]
    %v69 = vld [vmem:[#allocation5 + $0x8] sm:$0xf]
    %v70 = vld [vmem:[#allocation5 + $0xc] sm:$0xf]
    %v71 = vld [vmem:[#allocation5 + $0x10] sm:$0xf]
    %v72 = vld [vmem:[#allocation5 + $0x14] sm:$0xf]
    %v73 = vld [vmem:[#allocation5 + $0x18] sm:$0xf]
    %v74 = vld [vmem:[#allocation5 + $0x1c] sm:$0xf]
    %v75 = vld [vmem:[#allocation5 + $0x20] sm:$0xf]
    %v76 = vld [vmem:[#allocation5 + $0x24] sm:$0xf]
    %v77 = vld [vmem:[#allocation5 + $0x28] sm:$0xf]
    %v78 = vld [vmem:[#allocation5 + $0x2c] sm:$0xf]
    %v79 = vld [vmem:[#allocation5 + $0x30] sm:$0xf]
    %v80 = vld [vmem:[#allocation5 + $0x34] sm:$0xf]
    %v81 = vld [vmem:[#allocation5 + $0x38] sm:$0xf]
    %v82 = vld [vmem:[#allocation5 + $0x3c] sm:$0xf]
    %v83 = vld [vmem:[#allocation5 + $0x40] sm:$0xf]
    %v84 = vld [vmem:[#allocation5 + $0x44] sm:$0xf]
    %v85 = vld [vmem:[#allocation5 + $0x48] sm:$0xf]
    %v86 = vld [vmem:[#allocation5 + $0x4c] sm:$0xf]
    %v87 = vld [vmem:[#allocation5 + $0x50] sm:$0xf]
    %v88 = vld [vmem:[#allocation5 + $0x54] sm:$0xf]
    %v89 = vld [vmem:[#allocation5 + $0x58] sm:$0xf]
    %v90 = vld [vmem:[#allocation5 + $0x5c] sm:$0xf]
    %v91 = vld [vmem:[#allocation5 + $0x60] sm:$0xf]
    %v92 = vld [vmem:[#allocation5 + $0x64] sm:$0xf]
    %v93 = vld [vmem:[#allocation5 + $0x68] sm:$0xf]
    %v94 = vld [vmem:[#allocation5 + $0x6c] sm:$0xf]
    %v95 = vld [vmem:[#allocation5 + $0x70] sm:$0xf]
    %v96 = vld [vmem:[#allocation5 + $0x74] sm:$0xf]
    %v97 = vld [vmem:[#allocation5 + $0x78] sm:$0xf]
    %v98 = vld [vmem:[#allocation5 + $0x7c] sm:$0xf]
    %v99 = vld [vmem:[#allocation5 + $0x80] sm:$0xf]
    %v100 = vld [vmem:[#allocation5 + $0x84] sm:$0xf]
    %v101 = vld [vmem:[#allocation5 + $0x88] sm:$0xf]
    %v102 = vld [vmem:[#allocation5 + $0x8c] sm:$0xf]
    %v103 = vld [vmem:[#allocation5 + $0x90] sm:$0xf]
    %v104 = vld [vmem:[#allocation5 + $0x94] sm:$0xf]
    %v105 = vld [vmem:[#allocation5 + $0x98] sm:$0xf]
    %v106 = vld [vmem:[#allocation5 + $0x9c] sm:$0xf]
    %v107 = vld [vmem:[#allocation5 + $0xa0] sm:$0xf]
    %v108 = vld [vmem:[#allocation5 + $0xa4] sm:$0xf]
    %v109 = vld [vmem:[#allocation5 + $0xa8] sm:$0xf]
    %v110 = vld [vmem:[#allocation5 + $0xac] sm:$0xf]
    %v111 = vld [vmem:[#allocation5 + $0xb0] sm:$0xf]
    %v112 = vld [vmem:[#allocation5 + $0xb4] sm:$0xf]
    %v113 = vld [vmem:[#allocation5 + $0xb8] sm:$0xf]
    %v114 = vld [vmem:[#allocation5 + $0xbc] sm:$0xf]
    %v115 = vld [vmem:[#allocation5 + $0xc0] sm:$0xf]
    %v116 = vld [vmem:[#allocation5 + $0xc4] sm:$0xf]
    %v117 = vld [vmem:[#allocation5 + $0xc8] sm:$0xf]
    %v118 = vld [vmem:[#allocation5 + $0xcc] sm:$0xf]
    %v119 = vld [vmem:[#allocation5 + $0xd0] sm:$0xf]
    %v120 = vld [vmem:[#allocation5 + $0xd4] sm:$0xf]
    %v121 = vld [vmem:[#allocation5 + $0xd8] sm:$0xf]
    %v122 = vld [vmem:[#allocation5 + $0xdc] sm:$0xf]
    %v123 = vld [vmem:[#allocation5 + $0xe0] sm:$0xf]
    %v124 = vld [vmem:[#allocation5 + $0xe4] sm:$0xf]
    %v125 = vld [vmem:[#allocation5 + $0xe8] sm:$0xf]
    %v126 = vld [vmem:[#allocation5 + $0xec] sm:$0xf]
    %v127 = vld [vmem:[#allocation5 + $0xf0] sm:$0xf]
    %v128 = vld [vmem:[#allocation5 + $0xf4] sm:$0xf]
    %v129 = vld [vmem:[#allocation5 + $0xf8] sm:$0xf]
    %v130 = vld [vmem:[#allocation5 + $0xfc] sm:$0xf]
    %v131 = vld [vmem:[#allocation5 + $0x100] sm:$0xf]
    %v132 = vld [vmem:[#allocation5 + $0x104] sm:$0xf]
    %v133 = vld [vmem:[#allocation5 + $0x108] sm:$0xf]
    %v134 = vld [vmem:[#allocation5 + $0x10c] sm:$0xf]
    %v135 = vld [vmem:[#allocation5 + $0x110] sm:$0xf]
    %v136 = vld [vmem:[#allocation5 + $0x114] sm:$0xf]
    %v137 = vld [vmem:[#allocation5 + $0x118] sm:$0xf]
    %v138 = vld [vmem:[#allocation5 + $0x11c] sm:$0xf]
    %v139 = vld [vmem:[#allocation5 + $0x120] sm:$0xf]
    %v140 = vld [vmem:[#allocation5 + $0x124] sm:$0xf]
    %v141 = vld [vmem:[#allocation5 + $0x128] sm:$0xf]
    %v142 = vld [vmem:[#allocation5 + $0x12c] sm:$0xf]
    %v143 = vld [vmem:[#allocation5 + $0x130] sm:$0xf]
    %v144 = vld [vmem:[#allocation5 + $0x134] sm:$0xf]
    %v145 = vld [vmem:[#allocation5 + $0x138] sm:$0xf]
    %v146 = vld [vmem:[#allocation5 + $0x13c] sm:$0xf]
    %v147 = vld [vmem:[#allocation5 + $0x140] sm:$0xf]
    %v148 = vld [vmem:[#allocation5 + $0x144] sm:$0xf]
    %v149 = vld [vmem:[#allocation5 + $0x148] sm:$0xf]
    %v150 = vld [vmem:[#allocation5 + $0x14c] sm:$0xf]
    %v151 = vld [vmem:[#allocation5 + $0x150] sm:$0xf]
    %v152 = vld [vmem:[#allocation5 + $0x154] sm:$0xf]
    %v153 = vld [vmem:[#allocation5 + $0x158] sm:$0xf]
    %v154 = vld [vmem:[#allocation5 + $0x15c] sm:$0xf]
    %v155 = vld [vmem:[#allocation5 + $0x160] sm:$0xf]
    %v156 = vld [vmem:[#allocation5 + $0x164] sm:$0xf]
    %v157 = vld [vmem:[#allocation5 + $0x168] sm:$0xf]
    %v158 = vld [vmem:[#allocation5 + $0x16c] sm:$0xf]
    %v159 = vld [vmem:[#allocation5 + $0x170] sm:$0xf]
    %v160 = vld [vmem:[#allocation5 + $0x174] sm:$0xf]
    %v161 = vld [vmem:[#allocation5 + $0x178] sm:$0xf]
    %v162 = vld [vmem:[#allocation5 + $0x17c] sm:$0xf]
    %v163 = vld [vmem:[#allocation5 + $0x180] sm:$0xf]
    %v164 = vld [vmem:[#allocation5 + $0x184] sm:$0xf]
    %v165 = vld [vmem:[#allocation5 + $0x188] sm:$0xf]
    %v166 = vld [vmem:[#allocation5 + $0x18c] sm:$0xf]
    %v167 = vld [vmem:[#allocation5 + $0x190] sm:$0xf]
    %v168 = vld [vmem:[#allocation5 + $0x194] sm:$0xf]
    %v169 = vld [vmem:[#allocation5 + $0x198] sm:$0xf]
    %v170 = vld [vmem:[#allocation5 + $0x19c] sm:$0xf]
    %v171 = vld [vmem:[#allocation5 + $0x1a0] sm:$0xf]
    %v172 = vld [vmem:[#allocation5 + $0x1a4] sm:$0xf]
    %v173 = vld [vmem:[#allocation5 + $0x1a8] sm:$0xf]
    %v174 = vld [vmem:[#allocation5 + $0x1ac] sm:$0xf]
    %v175 = vld [vmem:[#allocation5 + $0x1b0] sm:$0xf]
    %v176 = vld [vmem:[#allocation5 + $0x1b4] sm:$0xf]
    %v177 = vld [vmem:[#allocation5 + $0x1b8] sm:$0xf]
    %v178 = vld [vmem:[#allocation5 + $0x1bc] sm:$0xf]
    %v179 = vld [vmem:[#allocation5 + $0x1c0] sm:$0xf]
    %v180 = vld [vmem:[#allocation5 + $0x1c4] sm:$0xf]
    %v181 = vld [vmem:[#allocation5 + $0x1c8] sm:$0xf]
    %v182 = vld [vmem:[#allocation5 + $0x1cc] sm:$0xf]
    %v183 = vld [vmem:[#allocation5 + $0x1d0] sm:$0xf]
    %v184 = vld [vmem:[#allocation5 + $0x1d4] sm:$0xf]
    %v185 = vld [vmem:[#allocation5 + $0x1d8] sm:$0xf]
    %v186 = vld [vmem:[#allocation5 + $0x1dc] sm:$0xf]
    %v187 = vld [vmem:[#allocation5 + $0x1e0] sm:$0xf]
    %v188 = vld [vmem:[#allocation5 + $0x1e4] sm:$0xf]
    %v189 = vld [vmem:[#allocation5 + $0x1e8] sm:$0xf]
    %v190 = vld [vmem:[#allocation5 + $0x1ec] sm:$0xf]
    %v191 = vld [vmem:[#allocation5 + $0x1f0] sm:$0xf]
    %v192 = vld [vmem:[#allocation5 + $0x1f4] sm:$0xf]
    %v193 = vld [vmem:[#allocation5 + $0x1f8] sm:$0xf]
    %v194 = vld [vmem:[#allocation5 + $0x1fc] sm:$0xf]
    %v203 = vunpack.c.l.b16 %v59
    %v204 = vunpack.c.h.b16 %v59
    %v205 = vunpack.c.l.b16 %v60
    %v206 = vunpack.c.h.b16 %v60
    %v207 = vunpack.c.l.b16 %v61
    %v208 = vunpack.c.h.b16 %v61
    %v209 = vunpack.c.l.b16 %v62
    %v210 = vunpack.c.h.b16 %v62
    %v211 = vunpack.c.l.b16 %v63
    %v212 = vunpack.c.h.b16 %v63
    %v213 = vunpack.c.l.b16 %v64
    %v214 = vunpack.c.h.b16 %v64
    %v215 = vunpack.c.l.b16 %v65
    %v216 = vunpack.c.h.b16 %v65
    %v217 = vunpack.c.l.b16 %v66
    %v218 = vunpack.c.h.b16 %v66
    %v219 = vpack.c.b16 %v211, %v203
    %v220 = vpack.c.b16 %v212, %v204
    %v221 = vpack.c.b16 %v213, %v205
    %v222 = vpack.c.b16 %v214, %v206
    %v223 = vpack.c.b16 %v215, %v207
    %v224 = vpack.c.b16 %v216, %v208
    %v225 = vpack.c.b16 %v217, %v209
    %v226 = vpack.c.b16 %v218, %v210
    %v363 = vunpack.c.l.b16 %v67
    %v364 = vunpack.c.l.b16 %v68
    %v365 = vunpack.c.l.b16 %v69
    %v366 = vunpack.c.l.b16 %v70
    %v367 = vunpack.c.l.b16 %v71
    %v368 = vunpack.c.l.b16 %v72
    %v369 = vunpack.c.l.b16 %v73
    %v370 = vunpack.c.l.b16 %v74
    %v371 = vunpack.c.l.b16 %v75
    %v372 = vunpack.c.l.b16 %v76
    %v373 = vunpack.c.l.b16 %v77
    %v374 = vunpack.c.l.b16 %v78
    %v375 = vunpack.c.l.b16 %v79
    %v376 = vunpack.c.l.b16 %v80
    %v377 = vunpack.c.l.b16 %v81
    %v378 = vunpack.c.l.b16 %v82
    %v379 = vunpack.c.l.b16 %v83
    %v380 = vunpack.c.l.b16 %v84
    %v381 = vunpack.c.l.b16 %v85
    %v382 = vunpack.c.l.b16 %v86
    %v383 = vunpack.c.l.b16 %v87
    %v384 = vunpack.c.l.b16 %v88
    %v385 = vunpack.c.l.b16 %v89
    %v386 = vunpack.c.l.b16 %v90
    %v387 = vunpack.c.l.b16 %v91
    %v388 = vunpack.c.l.b16 %v92
    %v389 = vunpack.c.l.b16 %v93
    %v390 = vunpack.c.l.b16 %v94
    %v391 = vunpack.c.l.b16 %v95
    %v392 = vunpack.c.l.b16 %v96
    %v393 = vunpack.c.l.b16 %v97
    %v394 = vunpack.c.l.b16 %v98
    %v395 = vunpack.c.l.b16 %v99
    %v396 = vunpack.c.l.b16 %v100
    %v397 = vunpack.c.l.b16 %v101
    %v398 = vunpack.c.l.b16 %v102
    %v399 = vunpack.c.l.b16 %v103
    %v400 = vunpack.c.l.b16 %v104
    %v401 = vunpack.c.l.b16 %v105
    %v402 = vunpack.c.l.b16 %v106
    %v403 = vunpack.c.l.b16 %v107
    %v404 = vunpack.c.l.b16 %v108
    %v405 = vunpack.c.l.b16 %v109
    %v406 = vunpack.c.l.b16 %v110
    %v407 = vunpack.c.l.b16 %v111
    %v408 = vunpack.c.l.b16 %v112
    %v409 = vunpack.c.l.b16 %v113
    %v410 = vunpack.c.l.b16 %v114
    %v411 = vunpack.c.l.b16 %v115
    %v412 = vunpack.c.l.b16 %v116
    %v413 = vunpack.c.l.b16 %v117
    %v414 = vunpack.c.l.b16 %v118
    %v415 = vunpack.c.l.b16 %v119
    %v416 = vunpack.c.l.b16 %v120
    %v417 = vunpack.c.l.b16 %v121
    %v418 = vunpack.c.l.b16 %v122
    %v419 = vunpack.c.l.b16 %v123
    %v420 = vunpack.c.l.b16 %v124
    %v421 = vunpack.c.l.b16 %v125
    %v422 = vunpack.c.l.b16 %v126
    %v423 = vunpack.c.l.b16 %v127
    %v424 = vunpack.c.l.b16 %v128
    %v425 = vunpack.c.l.b16 %v129
    %v426 = vunpack.c.l.b16 %v130
    %v427 = vunpack.c.l.b16 %v131
    %v428 = vunpack.c.l.b16 %v132
    %v429 = vunpack.c.l.b16 %v133
    %v430 = vunpack.c.l.b16 %v134
    %v431 = vunpack.c.l.b16 %v135
    %v432 = vunpack.c.l.b16 %v136
    %v433 = vunpack.c.l.b16 %v137
    %v434 = vunpack.c.l.b16 %v138
    %v435 = vunpack.c.l.b16 %v139
    %v436 = vunpack.c.l.b16 %v140
    %v437 = vunpack.c.l.b16 %v141
    %v438 = vunpack.c.l.b16 %v142
    %v439 = vunpack.c.l.b16 %v143
    %v440 = vunpack.c.l.b16 %v144
    %v441 = vunpack.c.l.b16 %v145
    %v442 = vunpack.c.l.b16 %v146
    %v443 = vunpack.c.l.b16 %v147
    %v444 = vunpack.c.l.b16 %v148
    %v445 = vunpack.c.l.b16 %v149
    %v446 = vunpack.c.l.b16 %v150
    %v447 = vunpack.c.l.b16 %v151
    %v448 = vunpack.c.l.b16 %v152
    %v449 = vunpack.c.l.b16 %v153
    %v450 = vunpack.c.l.b16 %v154
    %v451 = vunpack.c.l.b16 %v155
    %v452 = vunpack.c.l.b16 %v156
    %v453 = vunpack.c.l.b16 %v157
    %v454 = vunpack.c.l.b16 %v158
    %v455 = vunpack.c.l.b16 %v159
    %v456 = vunpack.c.l.b16 %v160
    %v457 = vunpack.c.l.b16 %v161
    %v458 = vunpack.c.l.b16 %v162
    %v459 = vunpack.c.l.b16 %v163
    %v460 = vunpack.c.l.b16 %v164
    %v461 = vunpack.c.l.b16 %v165
    %v462 = vunpack.c.l.b16 %v166
    %v463 = vunpack.c.l.b16 %v167
    %v464 = vunpack.c.l.b16 %v168
    %v465 = vunpack.c.l.b16 %v169
    %v466 = vunpack.c.l.b16 %v170
    %v467 = vunpack.c.l.b16 %v171
    %v468 = vunpack.c.l.b16 %v172
    %v469 = vunpack.c.l.b16 %v173
    %v470 = vunpack.c.l.b16 %v174
    %v471 = vunpack.c.l.b16 %v175
    %v472 = vunpack.c.l.b16 %v176
    %v473 = vunpack.c.l.b16 %v177
    %v474 = vunpack.c.l.b16 %v178
    %v475 = vunpack.c.l.b16 %v179
    %v476 = vunpack.c.l.b16 %v180
    %v477 = vunpack.c.l.b16 %v181
    %v478 = vunpack.c.l.b16 %v182
    %v479 = vunpack.c.l.b16 %v183
    %v480 = vunpack.c.l.b16 %v184
    %v481 = vunpack.c.l.b16 %v185
    %v482 = vunpack.c.l.b16 %v186
    %v483 = vunpack.c.l.b16 %v187
    %v484 = vunpack.c.l.b16 %v188
    %v485 = vunpack.c.l.b16 %v189
    %v486 = vunpack.c.l.b16 %v190
    %v487 = vunpack.c.l.b16 %v191
    %v488 = vunpack.c.l.b16 %v192
    %v489 = vunpack.c.l.b16 %v193
    %v490 = vunpack.c.l.b16 %v194
    %v491 = vpack.c.b16 %v364, %v363
    %v492 = vpack.c.b16 %v366, %v365
    %v493 = vpack.c.b16 %v368, %v367
    %v494 = vpack.c.b16 %v370, %v369
    %v495 = vpack.c.b16 %v372, %v371
    %v496 = vpack.c.b16 %v374, %v373
    %v497 = vpack.c.b16 %v376, %v375
    %v498 = vpack.c.b16 %v378, %v377
    %v499 = vpack.c.b16 %v380, %v379
    %v500 = vpack.c.b16 %v382, %v381
    %v501 = vpack.c.b16 %v384, %v383
    %v502 = vpack.c.b16 %v386, %v385
    %v503 = vpack.c.b16 %v388, %v387
    %v504 = vpack.c.b16 %v390, %v389
    %v505 = vpack.c.b16 %v392, %v391
    %v506 = vpack.c.b16 %v394, %v393
    %v507 = vpack.c.b16 %v396, %v395
    %v508 = vpack.c.b16 %v398, %v397
    %v509 = vpack.c.b16 %v400, %v399
    %v510 = vpack.c.b16 %v402, %v401
    %v511 = vpack.c.b16 %v404, %v403
    %v512 = vpack.c.b16 %v406, %v405
    %v513 = vpack.c.b16 %v408, %v407
    %v514 = vpack.c.b16 %v410, %v409
    %v515 = vpack.c.b16 %v412, %v411
    %v516 = vpack.c.b16 %v414, %v413
    %v517 = vpack.c.b16 %v416, %v415
    %v518 = vpack.c.b16 %v418, %v417
    %v519 = vpack.c.b16 %v420, %v419
    %v520 = vpack.c.b16 %v422, %v421
    %v521 = vpack.c.b16 %v424, %v423
    %v522 = vpack.c.b16 %v426, %v425
    %v523 = vpack.c.b16 %v428, %v427
    %v524 = vpack.c.b16 %v430, %v429
    %v525 = vpack.c.b16 %v432, %v431
    %v526 = vpack.c.b16 %v434, %v433
    %v527 = vpack.c.b16 %v436, %v435
    %v528 = vpack.c.b16 %v438, %v437
    %v529 = vpack.c.b16 %v440, %v439
    %v530 = vpack.c.b16 %v442, %v441
    %v531 = vpack.c.b16 %v444, %v443
    %v532 = vpack.c.b16 %v446, %v445
    %v533 = vpack.c.b16 %v448, %v447
    %v534 = vpack.c.b16 %v450, %v449
    %v535 = vpack.c.b16 %v452, %v451
    %v536 = vpack.c.b16 %v454, %v453
    %v537 = vpack.c.b16 %v456, %v455
    %v538 = vpack.c.b16 %v458, %v457
    %v539 = vpack.c.b16 %v460, %v459
    %v540 = vpack.c.b16 %v462, %v461
    %v541 = vpack.c.b16 %v464, %v463
    %v542 = vpack.c.b16 %v466, %v465
    %v543 = vpack.c.b16 %v468, %v467
    %v544 = vpack.c.b16 %v470, %v469
    %v545 = vpack.c.b16 %v472, %v471
    %v546 = vpack.c.b16 %v474, %v473
    %v547 = vpack.c.b16 %v476, %v475
    %v548 = vpack.c.b16 %v478, %v477
    %v549 = vpack.c.b16 %v480, %v479
    %v550 = vpack.c.b16 %v482, %v481
    %v551 = vpack.c.b16 %v484, %v483
    %v552 = vpack.c.b16 %v486, %v485
    %v553 = vpack.c.b16 %v488, %v487
    %v554 = vpack.c.b16 %v490, %v489
    %619 = vmatpush.bf16.msra.mxu0 %v498
    %620 = vmatpush.bf16.msra.mxu0 %v497
    %621 = vmatpush.bf16.msra.mxu0 %v496
    %622 = vmatpush.bf16.msra.mxu0 %v495
    %623 = vmatpush.bf16.msra.mxu0 %v494
    %624 = vmatpush.bf16.msra.mxu0 %v493
    %625 = vmatpush.bf16.msra.mxu0 %v492
    %626 = vmatpush.bf16.msra.mxu0 %v491
    %627 = vmatmul.bf16.gmra.mxu0 %v219
    %v628 = vpop.f32.mrf.mxu0
    %v629 = vadd.f32 0.0, %v628
    %v630 = vpop.f32.mrf.mxu0
    %v631 = vadd.f32 0.0, %v630
    %632 = vdwg.mxu0
    %633 = vmatpush.bf16.msra.mxu0 %v506
    %634 = vmatpush.bf16.msra.mxu0 %v505
    %635 = vmatpush.bf16.msra.mxu0 %v504
    %636 = vmatpush.bf16.msra.mxu0 %v503
    %637 = vmatpush.bf16.msra.mxu0 %v502
    %638 = vmatpush.bf16.msra.mxu0 %v501
    %639 = vmatpush.bf16.msra.mxu0 %v500
    %640 = vmatpush.bf16.msra.mxu0 %v499
    %641 = vmatmul.bf16.gmra.mxu0 %v220
    %v642 = vpop.f32.mrf.mxu0
    %v643 = vadd.f32 %v629, %v642
    %v644 = vpop.f32.mrf.mxu0
    %v645 = vadd.f32 %v631, %v644
    %646 = vdwg.mxu0
    %647 = vmatpush.bf16.msra.mxu0 %v514
    %648 = vmatpush.bf16.msra.mxu0 %v513
    %649 = vmatpush.bf16.msra.mxu0 %v512
    %650 = vmatpush.bf16.msra.mxu0 %v511
    %651 = vmatpush.bf16.msra.mxu0 %v510
    %652 = vmatpush.bf16.msra.mxu0 %v509
    %653 = vmatpush.bf16.msra.mxu0 %v508
    %654 = vmatpush.bf16.msra.mxu0 %v507
    %655 = vmatmul.bf16.gmra.mxu0 %v221
    %v656 = vpop.f32.mrf.mxu0
    %v657 = vadd.f32 %v643, %v656
    %v658 = vpop.f32.mrf.mxu0
    %v659 = vadd.f32 %v645, %v658
    %660 = vdwg.mxu0
    %661 = vmatpush.bf16.msra.mxu0 %v522
    %662 = vmatpush.bf16.msra.mxu0 %v521
    %663 = vmatpush.bf16.msra.mxu0 %v520
    %664 = vmatpush.bf16.msra.mxu0 %v519
    %665 = vmatpush.bf16.msra.mxu0 %v518
    %666 = vmatpush.bf16.msra.mxu0 %v517
    %667 = vmatpush.bf16.msra.mxu0 %v516
    %668 = vmatpush.bf16.msra.mxu0 %v515
    %669 = vmatmul.bf16.gmra.mxu0 %v222
    %v670 = vpop.f32.mrf.mxu0
    %v671 = vadd.f32 %v657, %v670
    %v672 = vpop.f32.mrf.mxu0
    %v673 = vadd.f32 %v659, %v672
    %674 = vdwg.mxu0
    %675 = vmatpush.bf16.msra.mxu0 %v530
    %676 = vmatpush.bf16.msra.mxu0 %v529
    %677 = vmatpush.bf16.msra.mxu0 %v528
    %678 = vmatpush.bf16.msra.mxu0 %v527
    %679 = vmatpush.bf16.msra.mxu0 %v526
    %680 = vmatpush.bf16.msra.mxu0 %v525
    %681 = vmatpush.bf16.msra.mxu0 %v524
    %682 = vmatpush.bf16.msra.mxu0 %v523
    %683 = vmatmul.bf16.gmra.mxu0 %v223
    %v684 = vpop.f32.mrf.mxu0
    %v685 = vadd.f32 %v671, %v684
    %v686 = vpop.f32.mrf.mxu0
    %v687 = vadd.f32 %v673, %v686
    %688 = vdwg.mxu0
    %689 = vmatpush.bf16.msra.mxu0 %v538
    %690 = vmatpush.bf16.msra.mxu0 %v537
    %691 = vmatpush.bf16.msra.mxu0 %v536
    %692 = vmatpush.bf16.msra.mxu0 %v535
    %693 = vmatpush.bf16.msra.mxu0 %v534
    %694 = vmatpush.bf16.msra.mxu0 %v533
    %695 = vmatpush.bf16.msra.mxu0 %v532
    %696 = vmatpush.bf16.msra.mxu0 %v531
    %697 = vmatmul.bf16.gmra.mxu0 %v224
    %v698 = vpop.f32.mrf.mxu0
    %v699 = vadd.f32 %v685, %v698
    %v700 = vpop.f32.mrf.mxu0
    %v701 = vadd.f32 %v687, %v700
    %702 = vdwg.mxu0
    %703 = vmatpush.bf16.msra.mxu0 %v546
    %704 = vmatpush.bf16.msra.mxu0 %v545
    %705 = vmatpush.bf16.msra.mxu0 %v544
    %706 = vmatpush.bf16.msra.mxu0 %v543
    %707 = vmatpush.bf16.msra.mxu0 %v542
    %708 = vmatpush.bf16.msra.mxu0 %v541
    %709 = vmatpush.bf16.msra.mxu0 %v540
    %710 = vmatpush.bf16.msra.mxu0 %v539
    %711 = vmatmul.bf16.gmra.mxu0 %v225
    %v712 = vpop.f32.mrf.mxu0
    %v713 = vadd.f32 %v699, %v712
    %v714 = vpop.f32.mrf.mxu0
    %v715 = vadd.f32 %v701, %v714
    %716 = vdwg.mxu0
    %717 = vmatpush.bf16.msra.mxu0 %v554
    %718 = vmatpush.bf16.msra.mxu0 %v553
    %719 = vmatpush.bf16.msra.mxu0 %v552
    %720 = vmatpush.bf16.msra.mxu0 %v551
    %721 = vmatpush.bf16.msra.mxu0 %v550
    %722 = vmatpush.bf16.msra.mxu0 %v549
    %723 = vmatpush.bf16.msra.mxu0 %v548
    %724 = vmatpush.bf16.msra.mxu0 %v547
    %725 = vmatmul.bf16.gmra.mxu0 %v226
    %v726 = vpop.f32.mrf.mxu0
    %v727 = vadd.f32 %v713, %v726
    %v728 = vpop.f32.mrf.mxu0
    %v729 = vadd.f32 %v715, %v728
    %730 = vdwg.mxu0
    %v731 = vadd.f32 %v57, %v727
    %v732 = vadd.f32 %v58, %v729
    %733 = vst [vmem:[#allocation7] sm:$0xff] %v731
    %734 = vst [vmem:[#allocation7 + $0x8] sm:$0xff] %v732
    // Predicated region
    $region26: #{tpu_custom_call.1} parent=1 // pred_check
      %p735 = pneg %p47
    $region27: #{tpu_custom_call.1} parent=1 // pred_check_branch
      %737 = sbr.rel (%p735) target = $region29
    $region28: #{tpu_custom_call.1} parent=1 // pred_region
      %v738 = vld [vmem:[#allocation7] sm:$0xff]
      %v739 = vld [vmem:[#allocation7 + $0x8] sm:$0xff]
      %v740 = vmul.f32 %v738, %v738
      %v741 = vmul.f32 %v739, %v739
      %742 = vadd.xlane.f32.xlu0 %v740
      %v743 = vpop.xlane.xlu0 %742
      %744 = vadd.xlane.f32.xlu0 %v741
      %v745 = vpop.xlane.xlu0 %744
      %v746 = vmax.f32 %v743, 1e-24
      %v747 = vmax.f32 %v745, 1e-24
      %v748 = vrsqrt.pop %v746
      %v749 = vmul.f32 %v748, %v746
      %v750 = vmul.f32 %v749, %v748
      %v751 = vmul.f32 0.5, %v750
      %v752 = vsub.f32 1.5, %v751
      %v753 = vmul.f32 %v748, %v752
      %vm754 = vweird.f32 %v746
      %vm755 = vweird.f32 %v748
      %vm756 = vmor %vm754, %vm755
      %v757 = vsel %vm756, %v748, %v753
      %v758 = vrsqrt.pop %v747
      %v759 = vmul.f32 %v758, %v747
      %v760 = vmul.f32 %v759, %v758
      %v761 = vmul.f32 0.5, %v760
      %v762 = vsub.f32 1.5, %v761
      %v763 = vmul.f32 %v758, %v762
      %vm764 = vweird.f32 %v747
      %vm765 = vweird.f32 %v758
      %vm766 = vmor %vm764, %vm765
      %v767 = vsel %vm766, %v758, %v763
      %v768 = vmul.f32 %v738, %v757
      %v769 = vmul.f32 %v739, %v767
      %770 = vst [vmem:[#allocation7] sm:$0xff] %v768
      %771 = vst [vmem:[#allocation7 + $0x8] sm:$0xff] %v769
    $region29: #{tpu_custom_call.1} parent=1 // pred_fallthru
      _
    // Predicated region
    $region30: #{tpu_custom_call.1} parent=1 // pred_check
      _
    $region31: #{tpu_custom_call.1} parent=1 // pred_check_branch
      %773 = sbr.rel (0) target = $region33
    $region32: #{tpu_custom_call.1} parent=1 // pred_region
      %775 = vsyncadd [#allocation4], 0
      %s776 = sshll.u32 [#allocation7], 4
      %s777 = int_to_ptr.vmem [resolvable:$true] %s776
      %s778 = sshll.u32 %s3, 4
      %s779 = int_to_ptr.hbm [resolvable:$true] %s778
      %784 = dma.vmem_to_hbm [thread:$0]  %s777, 256, %s779, [#allocation4], 128, 128, 8
    $region33: #{tpu_custom_call.1} parent=1 // pred_fallthru
      _
    // Predicated region
    $region34: #{tpu_custom_call.1} parent=1 // pred_check
      _
    $region35: #{tpu_custom_call.1} parent=1 // pred_check_branch
      %786 = sbr.rel (0) target = $region37
    $region36: #{tpu_custom_call.1} parent=1 // pred_region
      %788 = dma.done [#allocation4], 256
    $region37: #{tpu_custom_call.1} parent=1 // pred_fallthru
      _
    %789 = vsyncpa [#allocation3], 1
    %790 = vsyncpa [#allocation6], 1
    %791 = vsyncpa [#allocation4], 1

</llo_original>
